<compile_context>
chip_gen: v5e
topology: v5e:2x2
jax: 0.10.0
libtpu: 0.0.40
codegen_flags: <defaults>
</compile_context>

<pallas_src>
import functools

import jax
import jax.numpy as jnp
from jax.experimental import pallas as pl
from jax.experimental.pallas import tpu as pltpu


def _round_up(x, m):
    return ((x + m - 1) // m) * m


def _tpu_defaults():
    """Generation-aware tiling defaults (block budget, sample cap, scoped-VMEM
    limit, TensorCore shard count)."""
    kind = ""
    try:
        kind = jax.devices()[0].device_kind.lower()
    except Exception:
        pass
    if "v7" in kind:
        # v7x: 64 MiB physical VMEM (32 MiB scoped), 2 TensorCores per chip.
        return dict(block_budget=6 * 1024 * 1024, sample_cap=16384,
                    vmem_limit=32 * 1024 * 1024, num_shards=2)
    # v5e / v6e: 128 MiB physical VMEM, 1 TensorCore per chip.
    return dict(block_budget=12 * 1024 * 1024, sample_cap=32768,
                vmem_limit=64 * 1024 * 1024, num_shards=1)


def _ece_bin_stats_kernel(logits_ref, labels_ref,
                          cnt_ref, conf_ref, acc_ref,
                          *, n_bins, n_valid, tile_n, blocks_per_shard):
    shard = pl.program_id(0)
    blk = pl.program_id(1)

    # Output blocks keep the same block index across the inner ("arbitrary")
    # axis, so they stay VMEM-resident: accumulate directly into them.
    @pl.when(blk == 0)
    def _():
        cnt_ref[...] = jnp.zeros_like(cnt_ref)
        conf_ref[...] = jnp.zeros_like(conf_ref)
        acc_ref[...] = jnp.zeros_like(acc_ref)

    # [C, T] block: classes on sublanes, samples on lanes.  Cast after the DMA.
    logits = logits_ref[...].astype(jnp.float32)
    labels = labels_ref[...]                                       # [1, T] i32
    c_dim, t = logits.shape

    # Max-softmax confidence:  max prob = exp(0) / sum(exp(x - max)).
    row_max = jnp.max(logits, axis=0, keepdims=True)                   # [1, T]
    denom = jnp.sum(jnp.exp(logits - row_max), axis=0, keepdims=True)  # [1, T]
    # EUP approximate reciprocal + one Newton-Raphson step (~f32 accurate).
    r0 = pl.reciprocal(denom, approx=True)
    conf = r0 * (jnp.float32(2.0) - denom * r0)                        # [1, T]

    # argmax over classes (first occurrence of the max), lane-dense result.
    cls_iota = jax.lax.broadcasted_iota(jnp.int32, (c_dim, t), 0)
    pred = jnp.min(jnp.where(logits == row_max, cls_iota, c_dim),
                   axis=0, keepdims=True)                              # [1, T]
    correct = (pred == labels).astype(jnp.float32)                     # [1, T]

    # Mask ragged-tail / over-provisioned samples (global index >= n_valid).
    start = (shard * blocks_per_shard + blk) * tile_n
    lane = jax.lax.broadcasted_iota(jnp.int32, (1, t), 1)
    valid = (start + lane) < n_valid                                   # [1, T]

    # bin k covers (0.5 + k*w, 0.5 + (k+1)*w],  w = 0.5 / n_bins.
    scale = jnp.float32(2.0 * n_bins)                                  # 1 / w
    bid = jnp.ceil((conf - jnp.float32(0.5)) * scale).astype(jnp.int32) - 1
    bid = jnp.clip(bid, 0, n_bins - 1)
    in_range = jnp.logical_and(conf > jnp.float32(0.5), valid)         # [1, T]

    bins = jax.lax.broadcasted_iota(jnp.int32, (n_bins, t), 0)
    onehot = jnp.logical_and(bins == bid, in_range)          # [n_bins, T] bool

    # Boolean selects (no f32 convert / extra multiplies; NaN-safe for garbage
    # lanes of partial blocks) -> per-bin partial sums.
    zero = jnp.float32(0.0)
    cnt_ref[...] += jnp.sum(jnp.where(onehot, jnp.float32(1.0), zero),
                            axis=1, keepdims=True)
    conf_ref[...] += jnp.sum(jnp.where(onehot, conf, zero),
                             axis=1, keepdims=True)
    acc_ref[...] += jnp.sum(jnp.where(onehot, correct, zero),
                            axis=1, keepdims=True)


@functools.partial(jax.jit, static_argnames=("n_bins", "tile_n", "num_shards"))
def ece_loss(logits, labels, n_bins=10, tile_n=None, num_shards=None):
    """Pallas TPU implementation of _ECELoss.forward.  Returns shape (1,) f32."""
    n, c = logits.shape
    defaults = _tpu_defaults()
    # Budget with the in-kernel f32 working dtype (conservative for bf16 in).
    itemsize = max(jnp.dtype(logits.dtype).itemsize, 4)

    if num_shards is None:
        num_shards = defaults["num_shards"]
    if tile_n is None:
        t = defaults["block_budget"] // max(1, c * itemsize)
        t = max(128, min(defaults["sample_cap"], (t // 128) * 128))
        tile_n = min(t, _round_up(n, 128))
    assert tile_n % 128 == 0 and tile_n >= 128

    total_blocks = pl.cdiv(n, tile_n)
    num_shards = max(1, min(num_shards, total_blocks))
    blocks_per_shard = pl.cdiv(total_blocks, num_shards)
    last_blk = total_blocks - 1

    # Lane-dense streaming layout: a single transposed view [C, N] (one XLA
    # pass over the logits, no pad materialisation).  Labels reshape is free.
    logits_t = logits.T
    labels_2d = labels.astype(jnp.int32).reshape(1, n)

    def blk_idx(s, b):
        # Clamp over-provisioned grid steps (num_shards * blocks_per_shard may
        # exceed total_blocks); their samples are masked out in the kernel.
        return jnp.minimum(s * blocks_per_shard + b, last_blk)

    kernel = functools.partial(
        _ece_bin_stats_kernel, n_bins=n_bins, n_valid=n, tile_n=tile_n,
        blocks_per_shard=blocks_per_shard)

    out_sds = jax.ShapeDtypeStruct((num_shards, n_bins, 1), jnp.float32)
    out_spec = pl.BlockSpec((None, n_bins, 1), lambda s, b: (s, 0, 0))

    cnt, sum_conf, sum_acc = pl.pallas_call(
        kernel,
        out_shape=(out_sds, out_sds, out_sds),
        grid_spec=pltpu.PrefetchScalarGridSpec(
            num_scalar_prefetch=0,
            grid=(num_shards, blocks_per_shard),
            in_specs=[
                pl.BlockSpec((c, tile_n), lambda s, b: (0, blk_idx(s, b))),
                pl.BlockSpec((1, tile_n), lambda s, b: (0, blk_idx(s, b))),
            ],
            out_specs=[out_spec, out_spec, out_spec],
        ),
        compiler_params=pltpu.CompilerParams(
            dimension_semantics=("parallel", "arbitrary"),
            vmem_limit_bytes=defaults["vmem_limit"],
        ),
    )(logits_t, labels_2d)

    # Merge per-shard partials and finalize (tiny; plain JAX).
    cnt = jnp.sum(cnt, axis=(0, 2))            # [n_bins]
    sum_conf = jnp.sum(sum_conf, axis=(0, 2))  # [n_bins]
    sum_acc = jnp.sum(sum_acc, axis=(0, 2))    # [n_bins]

    prop_in_bin = cnt / jnp.float32(n)
    safe = jnp.maximum(cnt, 1.0)
    gap = jnp.abs(sum_conf / safe - sum_acc / safe)
    ece = jnp.sum(jnp.where(cnt > 0.0, gap * prop_in_bin, 0.0))
    return ece.reshape(1)


def _ece_reference(logits, labels, n_bins=10):
    """Pure-JAX reference mirroring the PyTorch module's forward exactly."""
    softmaxes = jax.nn.softmax(logits.astype(jnp.float32), axis=1)
    confidences = jnp.max(softmaxes, axis=1)
    predictions = jnp.argmax(softmaxes, axis=1)
    accuracies = (predictions == labels).astype(jnp.float32)
    boundaries = jnp.linspace(0.5, 1.0, n_bins + 1)
    ece = jnp.zeros((1,), jnp.float32)
    for b in range(n_bins):
        lo, hi = boundaries[b], boundaries[b + 1]
        in_bin = jnp.logical_and(confidences > lo, confidences <= hi)
        cnt = jnp.sum(in_bin.astype(jnp.float32))
        prop = cnt / confidences.shape[0]
        safe = jnp.maximum(cnt, 1.0)
        acc_in = jnp.sum(jnp.where(in_bin, accuracies, 0.0)) / safe
        conf_in = jnp.sum(jnp.where(in_bin, confidences, 0.0)) / safe
        ece = ece + jnp.where(cnt > 0, jnp.abs(conf_in - acc_in) * prop, 0.0)
    return ece


if __name__ == "__main__":
    key = jax.random.PRNGKey(0)
    k_logits, k_labels = jax.random.split(key)

    N, C = 300, 16   # small synthetic batch; N deliberately not a multiple of 128
    logits = jax.random.normal(k_logits, (N, C), dtype=jnp.float32) * 3.0
    labels = jax.random.randint(k_labels, (N,), 0, C, dtype=jnp.int32)

    ref = jax.block_until_ready(_ece_reference(logits, labels, n_bins=10))

    # Default tiling (single ragged block for this small batch).
    ece = jax.block_until_ready(ece_loss(logits, labels, n_bins=10))
    assert ece.shape == (1,)
    assert jnp.allclose(ece, ref, atol=1e-5), (ece, ref)

    # Multi-block, explicit 2-shard (dual-TC style) path: exercises the ragged
    # tail block and the clamped over-provisioned grid step.
    ece_grid = jax.block_until_ready(
        ece_loss(logits, labels, n_bins=10, tile_n=128, num_shards=2))
    assert jnp.allclose(ece_grid, ref, atol=1e-5), (ece_grid, ref)

    # Native-dtype (bf16) streaming path: kernel casts to f32 after the DMA.
    logits_bf16 = logits.astype(jnp.bfloat16)
    ref_bf16 = jax.block_until_ready(
        _ece_reference(logits_bf16, labels, n_bins=10))
    ece_bf16 = jax.block_until_ready(ece_loss(logits_bf16, labels, n_bins=10))
    assert jnp.allclose(ece_bf16, ref_bf16, atol=1e-5), (ece_bf16, ref_bf16)

    print("KERNEL_OK")
</pallas_src>

<mosaic_0001>
module attributes {stable_mosaic.version = 11 : i64} {
  func.func @_ece_bin_stats_kernel(%arg0: i32, %arg1: i32, %arg2: memref<16x384xf32, #tpu.memory_space<vmem>>, %arg3: memref<1x384xi32, #tpu.memory_space<vmem>>, %arg4: memref<1x10x1xf32, #tpu.memory_space<vmem>>, %arg5: memref<1x10x1xf32, #tpu.memory_space<vmem>>, %arg6: memref<1x10x1xf32, #tpu.memory_space<vmem>>) attributes {dimension_semantics = [#tpu.dimension_semantics<parallel>, #tpu.dimension_semantics<arbitrary>], iteration_bounds = array<i64: 1, 1>, scalar_prefetch = 0 : i64, scratch_operands = 0 : i64, tpu.core_type = #tpu.core_type<tc>, window_params = [{transform_indices = @transform_0, window_bounds = array<i64: 16, 384>}, {transform_indices = @transform_1, window_bounds = array<i64: 1, 384>}, {transform_indices = @transform_2, window_bounds = array<i64: 1, 10, 1>}, {transform_indices = @transform_3, window_bounds = array<i64: 1, 10, 1>}, {transform_indices = @transform_4, window_bounds = array<i64: 1, 10, 1>}]} {
    %c0_i32 = arith.constant 0 : i32
    %0 = arith.cmpi eq, %arg1, %c0_i32 : i32
    %1 = arith.extui %0 : i1 to i32
    %c0_i32_0 = arith.constant 0 : i32
    %2 = arith.cmpi ne, %1, %c0_i32_0 : i32
    scf.if %2 {
      %cst_37 = arith.constant 0.000000e+00 : f32
      %90 = vector.broadcast %cst_37 : f32 to vector<10x1xf32>
      %c0_38 = arith.constant 0 : index
      %c0_39 = arith.constant 0 : index
      %c0_40 = arith.constant 0 : index
      %91 = vector.load %arg4[%c0_38, %c0_39, %c0_40] : memref<1x10x1xf32, #tpu.memory_space<vmem>>, vector<1x10x1xf32>
      %92 = vector.shape_cast %91 : vector<1x10x1xf32> to vector<10x1xf32>
      %93 = vector.shape_cast %90 : vector<10x1xf32> to vector<1x10x1xf32>
      tpu.vector_store %arg4[%c0_38, %c0_39, %c0_40], %93 {strides = array<i32>} : memref<1x10x1xf32, #tpu.memory_space<vmem>>, vector<1x10x1xf32>,
      %cst_41 = arith.constant 0.000000e+00 : f32
      %94 = vector.broadcast %cst_41 : f32 to vector<10x1xf32>
      %c0_42 = arith.constant 0 : index
      %c0_43 = arith.constant 0 : index
      %c0_44 = arith.constant 0 : index
      %95 = vector.load %arg5[%c0_42, %c0_43, %c0_44] : memref<1x10x1xf32, #tpu.memory_space<vmem>>, vector<1x10x1xf32>
      %96 = vector.shape_cast %95 : vector<1x10x1xf32> to vector<10x1xf32>
      %97 = vector.shape_cast %94 : vector<10x1xf32> to vector<1x10x1xf32>
      tpu.vector_store %arg5[%c0_42, %c0_43, %c0_44], %97 {strides = array<i32>} : memref<1x10x1xf32, #tpu.memory_space<vmem>>, vector<1x10x1xf32>,
      %cst_45 = arith.constant 0.000000e+00 : f32
      %98 = vector.broadcast %cst_45 : f32 to vector<10x1xf32>
      %c0_46 = arith.constant 0 : index
      %c0_47 = arith.constant 0 : index
      %c0_48 = arith.constant 0 : index
      %99 = vector.load %arg6[%c0_46, %c0_47, %c0_48] : memref<1x10x1xf32, #tpu.memory_space<vmem>>, vector<1x10x1xf32>
      %100 = vector.shape_cast %99 : vector<1x10x1xf32> to vector<10x1xf32>
      %101 = vector.shape_cast %98 : vector<10x1xf32> to vector<1x10x1xf32>
      tpu.vector_store %arg6[%c0_46, %c0_47, %c0_48], %101 {strides = array<i32>} : memref<1x10x1xf32, #tpu.memory_space<vmem>>, vector<1x10x1xf32>,
    } else {
    }
    %c0 = arith.constant 0 : index
    %c0_1 = arith.constant 0 : index
    %3 = vector.load %arg2[%c0, %c0_1] : memref<16x384xf32, #tpu.memory_space<vmem>>, vector<16x384xf32>
    %c0_2 = arith.constant 0 : index
    %c0_3 = arith.constant 0 : index
    %4 = vector.load %arg3[%c0_2, %c0_3] : memref<1x384xi32, #tpu.memory_space<vmem>>, vector<1x384xi32>
    %cst = arith.constant dense<0xFF800000> : vector<384xf32>
    %5 = vector.multi_reduction <maximumf>, %3, %cst [0] : vector<16x384xf32> to vector<384xf32>
    %6 = vector.shape_cast %5 : vector<384xf32> to vector<1x384xf32>
    %7 = vector.broadcast %6 : vector<1x384xf32> to vector<16x384xf32>
    %8 = arith.subf %3, %7 : vector<16x384xf32>
    %9 = math.exp %8 : vector<16x384xf32>
    %cst_4 = arith.constant dense<0.000000e+00> : vector<384xf32>
    %10 = vector.multi_reduction <add>, %9, %cst_4 [0] : vector<16x384xf32> to vector<384xf32>
    %11 = vector.shape_cast %10 : vector<384xf32> to vector<1x384xf32>
    %12 = tpu.reciprocal %11 {approx = true} : vector<1x384xf32> -> vector<1x384xf32>
    %13 = arith.mulf %11, %12 : vector<1x384xf32>
    %cst_5 = arith.constant 2.000000e+00 : f32
    %14 = vector.broadcast %cst_5 : f32 to vector<1x384xf32>
    %15 = arith.subf %14, %13 : vector<1x384xf32>
    %16 = arith.mulf %12, %15 : vector<1x384xf32>
    %17 = tpu.iota {dimensions = array<i32: 0>} : vector<16x384xi32>
    %18 = vector.broadcast %6 : vector<1x384xf32> to vector<16x384xf32>
    %19 = arith.cmpf oeq, %3, %18 : vector<16x384xf32>
    %c16_i32 = arith.constant 16 : i32
    %20 = vector.broadcast %c16_i32 : i32 to vector<16x384xi32>
    %21 = arith.select %19, %17, %20 : vector<16x384xi1>, vector<16x384xi32>
    %cst_6 = arith.constant dense<2147483647> : vector<384xi32>
    %22 = vector.multi_reduction <minsi>, %21, %cst_6 [0] : vector<16x384xi32> to vector<384xi32>
    %23 = vector.shape_cast %22 : vector<384xi32> to vector<1x384xi32>
    %24 = arith.cmpi eq, %23, %4 : vector<1x384xi32>
    %25 = arith.extui %24 : vector<1x384xi1> to vector<1x384xi32>
    %26 = arith.sitofp %25 : vector<1x384xi32> to vector<1x384xf32>
    %c1_i32 = arith.constant 1 : i32
    %27 = arith.muli %arg0, %c1_i32 : i32
    %28 = arith.addi %27, %arg1 : i32
    %c384_i32 = arith.constant 384 : i32
    %29 = arith.muli %28, %c384_i32 : i32
    %30 = tpu.iota {dimensions = array<i32: 1>} : vector<1x384xi32>
    %31 = vector.broadcast %29 : i32 to vector<1x384xi32>
    %32 = arith.addi %31, %30 : vector<1x384xi32>
    %c300_i32 = arith.constant 300 : i32
    %33 = vector.broadcast %c300_i32 : i32 to vector<1x384xi32>
    %34 = arith.cmpi slt, %32, %33 : vector<1x384xi32>
    %cst_7 = arith.constant 5.000000e-01 : f32
    %35 = vector.broadcast %cst_7 : f32 to vector<1x384xf32>
    %36 = arith.subf %16, %35 : vector<1x384xf32>
    %cst_8 = arith.constant 2.000000e+01 : f32
    %37 = vector.broadcast %cst_8 : f32 to vector<1x384xf32>
    %38 = arith.mulf %36, %37 : vector<1x384xf32>
    %39 = math.ceil %38 : vector<1x384xf32>
    %40 = arith.fptosi %39 : vector<1x384xf32> to vector<1x384xi32>
    %c1_i32_9 = arith.constant 1 : i32
    %41 = vector.broadcast %c1_i32_9 : i32 to vector<1x384xi32>
    %42 = arith.subi %40, %41 : vector<1x384xi32>
    %c0_i32_10 = arith.constant 0 : i32
    %c9_i32 = arith.constant 9 : i32
    %43 = vector.broadcast %c0_i32_10 : i32 to vector<1x384xi32>
    %44 = arith.maxsi %43, %42 : vector<1x384xi32>
    %45 = vector.broadcast %c9_i32 : i32 to vector<1x384xi32>
    %46 = arith.minsi %45, %44 : vector<1x384xi32>
    %cst_11 = arith.constant 5.000000e-01 : f32
    %47 = vector.broadcast %cst_11 : f32 to vector<1x384xf32>
    %48 = arith.cmpf ogt, %16, %47 : vector<1x384xf32>
    %49 = arith.andi %48, %34 : vector<1x384xi1>
    %50 = tpu.iota {dimensions = array<i32: 0>} : vector<10x384xi32>
    %51 = vector.broadcast %46 : vector<1x384xi32> to vector<10x384xi32>
    %52 = arith.cmpi eq, %50, %51 : vector<10x384xi32>
    %53 = vector.broadcast %49 : vector<1x384xi1> to vector<10x384xi1>
    %54 = arith.andi %52, %53 : vector<10x384xi1>
    %c0_12 = arith.constant 0 : index
    %c0_13 = arith.constant 0 : index
    %c0_14 = arith.constant 0 : index
    %55 = vector.load %arg4[%c0_12, %c0_13, %c0_14] : memref<1x10x1xf32, #tpu.memory_space<vmem>>, vector<1x10x1xf32>
    %56 = vector.shape_cast %55 : vector<1x10x1xf32> to vector<10x1xf32>
    %cst_15 = arith.constant 1.000000e+00 : f32
    %cst_16 = arith.constant 0.000000e+00 : f32
    %57 = vector.broadcast %cst_15 : f32 to vector<10x384xf32>
    %58 = vector.broadcast %cst_16 : f32 to vector<10x384xf32>
    %59 = arith.select %54, %57, %58 : vector<10x384xi1>, vector<10x384xf32>
    %cst_17 = arith.constant dense<0.000000e+00> : vector<10xf32>
    %60 = vector.multi_reduction <add>, %59, %cst_17 [1] : vector<10x384xf32> to vector<10xf32>
    %61 = vector.shape_cast %60 : vector<10xf32> to vector<10x1xf32>
    %62 = arith.addf %56, %61 : vector<10x1xf32>
    %c0_18 = arith.constant 0 : index
    %c0_19 = arith.constant 0 : index
    %c0_20 = arith.constant 0 : index
    %63 = vector.load %arg4[%c0_18, %c0_19, %c0_20] : memref<1x10x1xf32, #tpu.memory_space<vmem>>, vector<1x10x1xf32>
    %64 = vector.shape_cast %63 : vector<1x10x1xf32> to vector<10x1xf32>
    %65 = vector.shape_cast %62 : vector<10x1xf32> to vector<1x10x1xf32>
    tpu.vector_store %arg4[%c0_18, %c0_19, %c0_20], %65 {strides = array<i32>} : memref<1x10x1xf32, #tpu.memory_space<vmem>>, vector<1x10x1xf32>,
    %c0_21 = arith.constant 0 : index
    %c0_22 = arith.constant 0 : index
    %c0_23 = arith.constant 0 : index
    %66 = vector.load %arg5[%c0_21, %c0_22, %c0_23] : memref<1x10x1xf32, #tpu.memory_space<vmem>>, vector<1x10x1xf32>
    %67 = vector.shape_cast %66 : vector<1x10x1xf32> to vector<10x1xf32>
    %cst_24 = arith.constant 0.000000e+00 : f32
    %68 = vector.shape_cast %16 : vector<1x384xf32> to vector<1x384xf32>
    %69 = vector.broadcast %68 : vector<1x384xf32> to vector<10x384xf32>
    %70 = vector.broadcast %cst_24 : f32 to vector<10x384xf32>
    %71 = arith.select %54, %69, %70 : vector<10x384xi1>, vector<10x384xf32>
    %cst_25 = arith.constant dense<0.000000e+00> : vector<10xf32>
    %72 = vector.multi_reduction <add>, %71, %cst_25 [1] : vector<10x384xf32> to vector<10xf32>
    %73 = vector.shape_cast %72 : vector<10xf32> to vector<10x1xf32>
    %74 = arith.addf %67, %73 : vector<10x1xf32>
    %c0_26 = arith.constant 0 : index
    %c0_27 = arith.constant 0 : index
    %c0_28 = arith.constant 0 : index
    %75 = vector.load %arg5[%c0_26, %c0_27, %c0_28] : memref<1x10x1xf32, #tpu.memory_space<vmem>>, vector<1x10x1xf32>
    %76 = vector.shape_cast %75 : vector<1x10x1xf32> to vector<10x1xf32>
    %77 = vector.shape_cast %74 : vector<10x1xf32> to vector<1x10x1xf32>
    tpu.vector_store %arg5[%c0_26, %c0_27, %c0_28], %77 {strides = array<i32>} : memref<1x10x1xf32, #tpu.memory_space<vmem>>, vector<1x10x1xf32>,
    %c0_29 = arith.constant 0 : index
    %c0_30 = arith.constant 0 : index
    %c0_31 = arith.constant 0 : index
    %78 = vector.load %arg6[%c0_29, %c0_30, %c0_31] : memref<1x10x1xf32, #tpu.memory_space<vmem>>, vector<1x10x1xf32>
    %79 = vector.shape_cast %78 : vector<1x10x1xf32> to vector<10x1xf32>
    %cst_32 = arith.constant 0.000000e+00 : f32
    %80 = vector.shape_cast %26 : vector<1x384xf32> to vector<1x384xf32>
    %81 = vector.broadcast %80 : vector<1x384xf32> to vector<10x384xf32>
    %82 = vector.broadcast %cst_32 : f32 to vector<10x384xf32>
    %83 = arith.select %54, %81, %82 : vector<10x384xi1>, vector<10x384xf32>
    %cst_33 = arith.constant dense<0.000000e+00> : vector<10xf32>
    %84 = vector.multi_reduction <add>, %83, %cst_33 [1] : vector<10x384xf32> to vector<10xf32>
    %85 = vector.shape_cast %84 : vector<10xf32> to vector<10x1xf32>
    %86 = arith.addf %79, %85 : vector<10x1xf32>
    %c0_34 = arith.constant 0 : index
    %c0_35 = arith.constant 0 : index
    %c0_36 = arith.constant 0 : index
    %87 = vector.load %arg6[%c0_34, %c0_35, %c0_36] : memref<1x10x1xf32, #tpu.memory_space<vmem>>, vector<1x10x1xf32>
    %88 = vector.shape_cast %87 : vector<1x10x1xf32> to vector<10x1xf32>
    %89 = vector.shape_cast %86 : vector<10x1xf32> to vector<1x10x1xf32>
    tpu.vector_store %arg6[%c0_34, %c0_35, %c0_36], %89 {strides = array<i32>} : memref<1x10x1xf32, #tpu.memory_space<vmem>>, vector<1x10x1xf32>,
    return
  }
  func.func @transform_0(%arg0: i32, %arg1: i32) -> (i32, i32) {
    %c1_i32 = arith.constant 1 : i32
    %0 = arith.muli %arg0, %c1_i32 : i32
    %1 = arith.addi %0, %arg1 : i32
    %c0_i32 = arith.constant 0 : i32
    %2 = arith.minsi %1, %c0_i32 : i32
    %c0_i32_0 = arith.constant 0 : i32
    %c0_i32_1 = arith.constant 0 : i32
    return %c0_i32_0, %2 : i32, i32
  }
  func.func @transform_1(%arg0: i32, %arg1: i32) -> (i32, i32) {
    %c1_i32 = arith.constant 1 : i32
    %0 = arith.muli %arg0, %c1_i32 : i32
    %1 = arith.addi %0, %arg1 : i32
    %c0_i32 = arith.constant 0 : i32
    %2 = arith.minsi %1, %c0_i32 : i32
    %c0_i32_0 = arith.constant 0 : i32
    %c0_i32_1 = arith.constant 0 : i32
    return %c0_i32_0, %2 : i32, i32
  }
  func.func @transform_2(%arg0: i32, %arg1: i32) -> (i32, i32, i32) {
    %c0_i32 = arith.constant 0 : i32
    %c0_i32_0 = arith.constant 0 : i32
    %c0_i32_1 = arith.constant 0 : i32
    return %arg0, %c0_i32, %c0_i32_0 : i32, i32, i32
  }
  func.func @transform_3(%arg0: i32, %arg1: i32) -> (i32, i32, i32) {
    %c0_i32 = arith.constant 0 : i32
    %c0_i32_0 = arith.constant 0 : i32
    %c0_i32_1 = arith.constant 0 : i32
    return %arg0, %c0_i32, %c0_i32_0 : i32, i32, i32
  }
  func.func @transform_4(%arg0: i32, %arg1: i32) -> (i32, i32, i32) {
    %c0_i32 = arith.constant 0 : i32
    %c0_i32_0 = arith.constant 0 : i32
    %c0_i32_1 = arith.constant 0 : i32
    return %arg0, %c0_i32, %c0_i32_0 : i32, i32, i32
  }
}

</mosaic_0001>

<llo_original>
// kernel: ece_loss.1
$region0: #{ece_loss.1}
  #allocation0 [shape = 'u32[]', space=smem, size = 0x4, offset = 0x4, fixed_abs, tag = 'smem constant byte address 0x4 - core index']
  #allocation1 [shape = 'u32[72,128]{1,0:T(1,128)}', space=vmem, size = 0x9000, scoped, tag = 'internal scratch']
  %s0 = inlined_call_operand.hbm [shape: f32[16,300], index: 0, kind: input, shape index: {}]
  %s1 = inlined_call_operand.vmem [shape: s32[1,300], index: 1, kind: input, shape index: {}]
  %s2 = inlined_call_operand.vmem [shape: f32[1,10,1], index: 2, kind: output, shape index: {0}]
  %s3 = inlined_call_operand.vmem [shape: f32[1,10,1], index: 3, kind: output, shape index: {1}]
  %s4 = inlined_call_operand.vmem [shape: f32[1,10,1], index: 4, kind: output, shape index: {2}]
  %5 = xla_tuple %s2, %s3, %s4
  %s6 = sld [smem:[#allocation0]]
  $region42: #{ece_loss.1} parent=0
    _
  %s8 = ssub.s32 1, %s6
  %s9 = scalar_select 0, %s8, %s6
  $region1: #{ece_loss.1} parent=0
    #allocation2 [shape = 'u8[24576]{0}', space=vmem, size = 0x6000, scoped, tag = 'input window, operand 0, single buffered']
    #allocation3 [shape = 's32[1]{0}', space=sflag, size = 0x4, scoped, tag = 'scoped memory for ece_loss.1']
    %10 = vsyncpa [#allocation3], 0
    // Predicated region
    $region2: #{ece_loss.1} parent=1 // pred_check
      _
    $region3: #{ece_loss.1} parent=1 // pred_check_branch
      %12 = sbr.rel (0) target = $region5
    $region4: #{ece_loss.1} parent=1 // pred_region
      %s13 = sadd.s32 0, 0
      %p14 = scmp.lt.s32.totalorder %s13, 0
      %s15 = scalar_select %p14, %s13, 0
      %s16 = smul.u32 3, %s15
      %18 = vsyncadd [#allocation3], 0
      %s19 = smul.addr %s16, 8
      %s20 = scalar_lea.hbm %s0, %s19
      %s21 = sshll.u32 %s20, 4
      %s22 = int_to_ptr.hbm [resolvable:$true] %s21
      %s23 = sshll.u32 [#allocation2], 4
      %s24 = int_to_ptr.vmem [resolvable:$true] %s23
      %29 = dma.hbm_to_vmem [thread:$0]  %s22, 768, %s24, [#allocation3], 384, 384, 24
    $region5: #{ece_loss.1} parent=1 // pred_fallthru
      _
    // Predicated region
    $region6: #{ece_loss.1} parent=1 // pred_check
      _
    $region7: #{ece_loss.1} parent=1 // pred_check_branch
      %31 = sbr.rel (0) target = $region9
    $region8: #{ece_loss.1} parent=1 // pred_region
      %s32 = sadd.s32 0, 0
      %p33 = scmp.lt.s32.totalorder %s32, 0
      %s34 = scalar_select %p33, %s32, 0
      %s35 = smul.u32 3, %s34
      %p36 = scmp.lt.s32.totalorder %s35, 2
      %s37 = scalar_select %p36, %s35, 2
      %s38 = scalar_lea.vmem %s1, %s37
      %s39 = sadd.s32 0, 0
      %p40 = scmp.lt.s32.totalorder %s39, 0
      %s41 = scalar_select %p40, %s39, 0
      %s42 = smul.u32 3, %s41
    $region9: #{ece_loss.1} parent=1 // pred_fallthru
      _
    // Predicated region
    $region10: #{ece_loss.1} parent=1 // pred_check
      _
    $region11: #{ece_loss.1} parent=1 // pred_check_branch
      %44 = sbr.rel (0) target = $region13
    $region12: #{ece_loss.1} parent=1 // pred_region
      %46 = dma.done [#allocation3], 768
    $region13: #{ece_loss.1} parent=1 // pred_fallthru
      _
    %s47 = sadd.s32 0, 0
    %p48 = scmp.lt.s32.totalorder %s47, 0
    %s49 = scalar_select %p48, %s47, 0
    %s50 = smul.u32 3, %s49
    %p51 = scmp.lt.s32.totalorder %s50, 2
    %s52 = scalar_select %p51, %s50, 2
    %s53 = scalar_lea.vmem %s1, %s52
    %s54 = sadd.s32 0, 0
    %p55 = scmp.lt.s32.totalorder %s54, 0
    %s56 = scalar_select %p55, %s54, 0
    %s57 = smul.u32 3, %s56
    %s58 = sadd.s32 0, 0
    %p59 = scmp.lt.s32.totalorder %s58, 0
    %s60 = scalar_select %p59, %s58, 0
    %s61 = smul.u32 3, %s60
    %p62 = scmp.lt.s32.totalorder %s61, 2
    %s63 = scalar_select %p62, %s61, 2
    %s64 = scalar_lea.vmem %s1, %s63
    %s65 = sadd.s32 0, 0
    %p66 = scmp.lt.s32.totalorder %s65, 0
    %s67 = scalar_select %p66, %s65, 0
    %s68 = smul.u32 3, %s67
    %p69 = scmp.eq.s32.totalorder 0, 0
    // Predicated region
    $region14: #{ece_loss.1} parent=1 // pred_check
      %p70 = pneg %p69
    $region15: #{ece_loss.1} parent=1 // pred_check_branch
      %72 = sbr.rel (%p70) target = $region17
    $region16: #{ece_loss.1} parent=1 // pred_region
      %vm73 = vcmask 7168
      %74 = vst.msk [vmem:[%s2] sm:$0xff] %vm73, 0.0
      %vm75 = vcmask 1024
      %76 = vst.msk [vmem:[%s2 + $0x8] sm:$0x3] %vm75, 0.0
      %77 = vst.msk [vmem:[%s3] sm:$0xff] %vm73, 0.0
      %78 = vst.msk [vmem:[%s3 + $0x8] sm:$0x3] %vm75, 0.0
      %79 = vst.msk [vmem:[%s4] sm:$0xff] %vm73, 0.0
      %80 = vst.msk [vmem:[%s4 + $0x8] sm:$0x3] %vm75, 0.0
    $region17: #{ece_loss.1} parent=1 // pred_fallthru
      _
    %v81 = vld [vmem:[#allocation2] sm:$0xff]
    %v82 = vld [vmem:[#allocation2 + $0x8] sm:$0xff]
    %v83 = vld [vmem:[#allocation2 + $0x10] sm:$0xff]
    %v84 = vld [vmem:[#allocation2 + $0x18] sm:$0xff]
    %v85 = vld [vmem:[#allocation2 + $0x20] sm:$0xff]
    %v86 = vld [vmem:[#allocation2 + $0x28] sm:$0xff]
    %v87 = vld [vmem:[%s64] sm:$0x7]
    %v88 = vmax.f32 %v81, %v84
    %v89 = vrot.slane %v88, 4
    %v90 = vmax.f32 %v88, %v89
    %v91 = vrot.slane %v90, 2
    %v92 = vmax.f32 %v90, %v91
    %v93 = vrot.slane %v92, 1
    %v94 = vmax.f32 %v92, %v93
    %v95 = vmax.f32 %v82, %v85
    %v96 = vrot.slane %v95, 4
    %v97 = vmax.f32 %v95, %v96
    %v98 = vrot.slane %v97, 2
    %v99 = vmax.f32 %v97, %v98
    %v100 = vrot.slane %v99, 1
    %v101 = vmax.f32 %v99, %v100
    %v102 = vmax.f32 %v83, %v86
    %v103 = vrot.slane %v102, 4
    %v104 = vmax.f32 %v102, %v103
    %v105 = vrot.slane %v104, 2
    %v106 = vmax.f32 %v104, %v105
    %v107 = vrot.slane %v106, 1
    %v108 = vmax.f32 %v106, %v107
    %v109 = vsub.f32 %v81, %v94
    %v110 = vsub.f32 %v82, %v101
    %v111 = vsub.f32 %v83, %v108
    %v112 = vsub.f32 %v84, %v94
    %v113 = vsub.f32 %v85, %v101
    %v114 = vsub.f32 %v86, %v108
    %v115 = vmul.f32 %v109, 1.442695
    %v116 = vpow.pop %v115
    %v117 = vmul.f32 %v110, 1.442695
    %v118 = vpow.pop %v117
    %v119 = vmul.f32 %v111, 1.442695
    %v120 = vpow.pop %v119
    %v121 = vmul.f32 %v112, 1.442695
    %v122 = vpow.pop %v121
    %v123 = vmul.f32 %v113, 1.442695
    %v124 = vpow.pop %v123
    %v125 = vmul.f32 %v114, 1.442695
    %v126 = vpow.pop %v125
    %v127 = vadd.f32 %v116, %v122
    %v128 = vrot.slane %v127, 4
    %v129 = vadd.f32 %v127, %v128
    %v130 = vrot.slane %v129, 2
    %v131 = vadd.f32 %v129, %v130
    %v132 = vrot.slane %v131, 1
    %v133 = vadd.f32 %v131, %v132
    %v134 = vadd.f32 %v118, %v124
    %v135 = vrot.slane %v134, 4
    %v136 = vadd.f32 %v134, %v135
    %v137 = vrot.slane %v136, 2
    %v138 = vadd.f32 %v136, %v137
    %v139 = vrot.slane %v138, 1
    %v140 = vadd.f32 %v138, %v139
    %v141 = vadd.f32 %v120, %v126
    %v142 = vrot.slane %v141, 4
    %v143 = vadd.f32 %v141, %v142
    %v144 = vrot.slane %v143, 2
    %v145 = vadd.f32 %v143, %v144
    %v146 = vrot.slane %v145, 1
    %v147 = vadd.f32 %v145, %v146
    %v148 = vrcp.pop %v133
    %v149 = vrcp.pop %v140
    %v150 = vrcp.pop %v147
    %v151 = vmul.f32 %v133, %v148
    %v152 = vmul.f32 %v140, %v149
    %v153 = vmul.f32 %v147, %v150
    %v154 = vsub.f32 2.0, %v151
    %v155 = vsub.f32 2.0, %v152
    %v156 = vsub.f32 2.0, %v153
    %v157 = vmul.f32 %v148, %v154
    %v158 = vmul.f32 %v149, %v155
    %v159 = vmul.f32 %v150, %v156
    %v160 = vlaneseq
    %v161 = vshrl.u32 %v160, 7
    %v162 = vadd.s32 %v161, 8
    %vm163 = vcmp.eq.f32.partialorder %v81, %v94
    %vm164 = vcmp.eq.f32.partialorder %v82, %v101
    %vm165 = vcmp.eq.f32.partialorder %v83, %v108
    %vm166 = vcmp.eq.f32.partialorder %v84, %v94
    %vm167 = vcmp.eq.f32.partialorder %v85, %v101
    %vm168 = vcmp.eq.f32.partialorder %v86, %v108
    %v169 = vsel %vm163, %v161, 16
    %v170 = vsel %vm164, %v161, 16
    %v171 = vsel %vm165, %v161, 16
    %v172 = vsel %vm166, %v162, 16
    %v173 = vsel %vm167, %v162, 16
    %v174 = vsel %vm168, %v162, 16
    %vm175 = vcmp.lt.s32.totalorder %v169, %v172
    %v176 = vsel %vm175, %v169, %v172
    %v177 = vrot.slane %v176, 4
    %vm178 = vcmp.lt.s32.totalorder %v176, %v177
    %v179 = vsel %vm178, %v176, %v177
    %v180 = vrot.slane %v179, 2
    %vm181 = vcmp.lt.s32.totalorder %v179, %v180
    %v182 = vsel %vm181, %v179, %v180
    %v183 = vrot.slane %v182, 1
    %vm184 = vcmp.lt.s32.totalorder %v182, %v183
    %v185 = vsel %vm184, %v182, %v183
    %vm186 = vcmp.lt.s32.totalorder %v170, %v173
    %v187 = vsel %vm186, %v170, %v173
    %v188 = vrot.slane %v187, 4
    %vm189 = vcmp.lt.s32.totalorder %v187, %v188
    %v190 = vsel %vm189, %v187, %v188
    %v191 = vrot.slane %v190, 2
    %vm192 = vcmp.lt.s32.totalorder %v190, %v191
    %v193 = vsel %vm192, %v190, %v191
    %v194 = vrot.slane %v193, 1
    %vm195 = vcmp.lt.s32.totalorder %v193, %v194
    %v196 = vsel %vm195, %v193, %v194
    %vm197 = vcmp.lt.s32.totalorder %v171, %v174
    %v198 = vsel %vm197, %v171, %v174
    %v199 = vrot.slane %v198, 4
    %vm200 = vcmp.lt.s32.totalorder %v198, %v199
    %v201 = vsel %vm200, %v198, %v199
    %v202 = vrot.slane %v201, 2
    %vm203 = vcmp.lt.s32.totalorder %v201, %v202
    %v204 = vsel %vm203, %v201, %v202
    %v205 = vrot.slane %v204, 1
    %vm206 = vcmp.lt.s32.totalorder %v204, %v205
    %v207 = vsel %vm206, %v204, %v205
    %v208 = vperm.slane %v87, 0
    %v209 = vperm.slane %v87, 1
    %v210 = vperm.slane %v87, 2
    %vm211 = vcmp.eq.s32.totalorder %v185, %v208
    %vm212 = vcmp.eq.s32.totalorder %v196, %v209
    %vm213 = vcmp.eq.s32.totalorder %v207, %v210
    %v214 = vsel %vm211, 1, 0
    %v215 = vsel %vm212, 1, 0
    %v216 = vsel %vm213, 1, 0
    %v217 = vcvt.s32.f32 %v214
    %v218 = vcvt.s32.f32 %v215
    %v219 = vcvt.s32.f32 %v216
    %s220 = sadd.s32 0, 0
    %s221 = smul.u32 %s220, 384
    %v222 = vlaneseq
    %v223 = vand.u32 %v222, 127
    %v224 = vadd.s32 %v223, 128
    %v225 = vadd.s32 %v223, 256
    %v226 = vstv %s221
    %v227 = vadd.s32 %v226, %v223
    %v228 = vadd.s32 %v226, %v224
    %v229 = vadd.s32 %v226, %v225
    %vm230 = vcmp.lt.s32.totalorder %v227, 300
    %vm231 = vcmp.lt.s32.totalorder %v228, 300
    %vm232 = vcmp.lt.s32.totalorder %v229, 300
    %v233 = vsub.f32 %v157, 0.5
    %v234 = vsub.f32 %v158, 0.5
    %v235 = vsub.f32 %v159, 0.5
    %v236 = vmul.f32 %v233, 20.0
    %v237 = vmul.f32 %v234, 20.0
    %v238 = vmul.f32 %v235, 20.0
    %v239 = vceil.f32 %v236
    %v240 = vceil.f32 %v237
    %v241 = vceil.f32 %v238
    %v242 = vcvt.f32.s32.to.zero.pseudo %v239
    %v243 = vcvt.f32.s32.to.zero.pseudo %v240
    %v244 = vcvt.f32.s32.to.zero.pseudo %v241
    %v245 = vsub.s32 %v242, 1
    %v246 = vsub.s32 %v243, 1
    %v247 = vsub.s32 %v244, 1
    %vm248 = vcmp.gt.s32.totalorder %v245, 0
    %v249 = vsel %vm248, %v245, 0
    %vm250 = vcmp.gt.s32.totalorder %v246, 0
    %v251 = vsel %vm250, %v246, 0
    %vm252 = vcmp.gt.s32.totalorder %v247, 0
    %v253 = vsel %vm252, %v247, 0
    %vm254 = vcmp.lt.s32.totalorder %v249, 9
    %v255 = vsel %vm254, %v249, 9
    %vm256 = vcmp.lt.s32.totalorder %v251, 9
    %v257 = vsel %vm256, %v251, 9
    %vm258 = vcmp.lt.s32.totalorder %v253, 9
    %v259 = vsel %vm258, %v253, 9
    %vm260 = vcmp.gt.f32.partialorder %v157, 0.5
    %vm261 = vcmp.gt.f32.partialorder %v158, 0.5
    %vm262 = vcmp.gt.f32.partialorder %v159, 0.5
    %vm263 = vmand %vm260, %vm230
    %vm264 = vmand %vm261, %vm231
    %vm265 = vmand %vm262, %vm232
    %vm266 = vcmp.eq.s32.totalorder %v161, %v255
    %vm267 = vcmp.eq.s32.totalorder %v161, %v257
    %vm268 = vcmp.eq.s32.totalorder %v161, %v259
    %vm269 = vcmp.eq.s32.totalorder %v162, %v255
    %vm270 = vcmp.eq.s32.totalorder %v162, %v257
    %vm271 = vcmp.eq.s32.totalorder %v162, %v259
    %v272 = vsel %vm263, 1, 0
    %v273 = vsel %vm264, 1, 0
    %v274 = vsel %vm265, 1, 0
    %vm275 = vcmp.eq.s32.totalorder %v272, 1
    %vm276 = vcmp.eq.s32.totalorder %v273, 1
    %vm277 = vcmp.eq.s32.totalorder %v274, 1
    %vm278 = vmand %vm266, %vm275
    %vm279 = vmand %vm267, %vm276
    %vm280 = vmand %vm268, %vm277
    %vm281 = vmand %vm269, %vm275
    %vm282 = vmand %vm270, %vm276
    %vm283 = vmand %vm271, %vm277
    %v284 = vld [vmem:[%s2] sm:$0xff]
    %v285 = vld [vmem:[%s2 + $0x8] sm:$0x3]
    %v286 = vsel %vm278, 1.0, 0.0
    %v287 = vsel %vm279, 1.0, 0.0
    %v288 = vsel %vm280, 1.0, 0.0
    %v289 = vsel %vm281, 1.0, 0.0
    %v290 = vsel %vm282, 1.0, 0.0
    %v291 = vsel %vm283, 1.0, 0.0
    %v292 = vadd.f32 %v286, %v287
    %v293 = vadd.f32 %v292, %v288
    %294 = vadd.xlane.f32.xlu0 %v293
    %v295 = vpop.xlane.xlu0 %294
    %vm296 = vcmask 1041408
    %v297 = vsel %vm296, %v289, 0.0
    %v298 = vsel %vm296, %v290, 0.0
    %v299 = vadd.f32 %v297, %v298
    %v300 = vsel %vm296, %v291, 0.0
    %v301 = vadd.f32 %v299, %v300
    %302 = vadd.xlane.f32.xlu0 %v301
    %v303 = vpop.xlane.xlu0 %302
    %v304 = vadd.f32 %v284, %v295
    %v305 = vadd.f32 %v285, %v303
    %vm306 = vcmask 7168
    %307 = vst.msk [vmem:[%s2] sm:$0xff] %vm306, %v304
    %vm308 = vcmask 1024
    %309 = vst.msk [vmem:[%s2 + $0x8] sm:$0x3] %vm308, %v305
    %v310 = vld [vmem:[%s3] sm:$0xff]
    %v311 = vld [vmem:[%s3 + $0x8] sm:$0x3]
    %v312 = vsel %vm278, %v157, 0.0
    %v313 = vsel %vm279, %v158, 0.0
    %v314 = vsel %vm280, %v159, 0.0
    %v315 = vsel %vm281, %v157, 0.0
    %v316 = vsel %vm282, %v158, 0.0
    %v317 = vsel %vm283, %v159, 0.0
    %v318 = vadd.f32 %v312, %v313
    %v319 = vadd.f32 %v318, %v314
    %320 = vadd.xlane.f32.xlu0 %v319
    %v321 = vpop.xlane.xlu0 %320
    %v322 = vsel %vm296, %v315, 0.0
    %v323 = vsel %vm296, %v316, 0.0
    %v324 = vadd.f32 %v322, %v323
    %v325 = vsel %vm296, %v317, 0.0
    %v326 = vadd.f32 %v324, %v325
    %327 = vadd.xlane.f32.xlu0 %v326
    %v328 = vpop.xlane.xlu0 %327
    %v329 = vadd.f32 %v310, %v321
    %v330 = vadd.f32 %v311, %v328
    %331 = vst.msk [vmem:[%s3] sm:$0xff] %vm306, %v329
    %332 = vst.msk [vmem:[%s3 + $0x8] sm:$0x3] %vm308, %v330
    %v333 = vld [vmem:[%s4] sm:$0xff]
    %v334 = vld [vmem:[%s4 + $0x8] sm:$0x3]
    %v335 = vperm.slane %v217, 0
    %v336 = vperm.slane %v218, 0
    %v337 = vperm.slane %v219, 0
    %v338 = vsel %vm278, %v335, 0.0
    %v339 = vsel %vm279, %v336, 0.0
    %v340 = vsel %vm280, %v337, 0.0
    %v341 = vsel %vm281, %v335, 0.0
    %v342 = vsel %vm282, %v336, 0.0
    %v343 = vsel %vm283, %v337, 0.0
    %v344 = vadd.f32 %v338, %v339
    %v345 = vadd.f32 %v344, %v340
    %346 = vadd.xlane.f32.xlu0 %v345
    %v347 = vpop.xlane.xlu0 %346
    %v348 = vsel %vm296, %v341, 0.0
    %v349 = vsel %vm296, %v342, 0.0
    %v350 = vadd.f32 %v348, %v349
    %v351 = vsel %vm296, %v343, 0.0
    %v352 = vadd.f32 %v350, %v351
    %353 = vadd.xlane.f32.xlu0 %v352
    %v354 = vpop.xlane.xlu0 %353
    %v355 = vadd.f32 %v333, %v347
    %v356 = vadd.f32 %v334, %v354
    %357 = vst.msk [vmem:[%s4] sm:$0xff] %vm306, %v355
    %358 = vst.msk [vmem:[%s4 + $0x8] sm:$0x3] %vm308, %v356
    // Predicated region
    $region18: #{ece_loss.1} parent=1 // pred_check
      _
    $region19: #{ece_loss.1} parent=1 // pred_check_branch
      %360 = sbr.rel (0) target = $region21
    $region20: #{ece_loss.1} parent=1 // pred_region
      _
    $region21: #{ece_loss.1} parent=1 // pred_fallthru
      _
    // Predicated region
    $region22: #{ece_loss.1} parent=1 // pred_check
      _
    $region23: #{ece_loss.1} parent=1 // pred_check_branch
      %362 = sbr.rel (0) target = $region25
    $region24: #{ece_loss.1} parent=1 // pred_region
      _
    $region25: #{ece_loss.1} parent=1 // pred_fallthru
      _
    // Predicated region
    $region26: #{ece_loss.1} parent=1 // pred_check
      _
    $region27: #{ece_loss.1} parent=1 // pred_check_branch
      %364 = sbr.rel (0) target = $region29
    $region28: #{ece_loss.1} parent=1 // pred_region
      _
    $region29: #{ece_loss.1} parent=1 // pred_fallthru
      _
    // Predicated region
    $region30: #{ece_loss.1} parent=1 // pred_check
      _
    $region31: #{ece_loss.1} parent=1 // pred_check_branch
      %366 = sbr.rel (0) target = $region33
    $region32: #{ece_loss.1} parent=1 // pred_region
      _
    $region33: #{ece_loss.1} parent=1 // pred_fallthru
      _
    // Predicated region
    $region34: #{ece_loss.1} parent=1 // pred_check
      _
    $region35: #{ece_loss.1} parent=1 // pred_check_branch
      %368 = sbr.rel (0) target = $region37
    $region36: #{ece_loss.1} parent=1 // pred_region
      _
    $region37: #{ece_loss.1} parent=1 // pred_fallthru
      _
    // Predicated region
    $region38: #{ece_loss.1} parent=1 // pred_check
      _
    $region39: #{ece_loss.1} parent=1 // pred_check_branch
      %370 = sbr.rel (0) target = $region41
    $region40: #{ece_loss.1} parent=1 // pred_region
      _
    $region41: #{ece_loss.1} parent=1 // pred_fallthru
      _
    %371 = vsyncpa [#allocation3], 1

</llo_original>
